<compile_context>
chip_gen: v5e
topology: v5e:2x2
jax: 0.10.0
libtpu: 0.0.40
codegen_flags: <defaults>
</compile_context>

<pallas_src>
import jax
import jax.numpy as jnp
from jax import lax
from jax.experimental import pallas as pl
from jax.experimental.pallas import tpu as pltpu


def _round_up(x: int, m: int) -> int:
    return (x + m - 1) // m * m


def _vmem_budget_bytes() -> int:
    """~3/4 of physical VMEM: ~48 MiB on v7x (64 MiB/TC), ~96 MiB on v5e/v6e."""
    cap = 64 * 1024 * 1024  # conservative default (v7x per-TC)
    try:
        cap = int(pltpu.get_tpu_info().vmem_capacity_bytes)
    except Exception:
        pass
    return max(32 * 1024 * 1024, min((cap * 3) // 4, 112 * 1024 * 1024))


# ---------------------------------------------------------------------------
# Fast path: embedding table resident in VMEM, rows gathered by dynamic loads.
# ---------------------------------------------------------------------------
def _make_resident_kernel(Tp: int, TT: int, unroll: int):
    def kernel(tok_ref, len_ref, table_ref, out_ref):
        # tok_ref:   SMEM (B*Tp,) int32  flattened token ids (scalar prefetch)
        # len_ref:   SMEM (B,)    int32  per-sequence lengths (scalar prefetch)
        # table_ref: VMEM (V, Dp)        whole table, resident (constant index_map)
        # out_ref:   VMEM (TT, Dp)       output tile (batch dim squeezed)
        b = pl.program_id(0)
        t = pl.program_id(1)
        base = b * Tp + t * TT
        length = len_ref[b]
        pos0 = t * TT

        def gather_row(r, carry):
            tid = tok_ref[base + r]
            row = table_ref[pl.ds(tid, 1), :]                   # (1, Dp) VMEM load
            keep = ((pos0 + r) < length).astype(row.dtype)      # length mask (scalar)
            out_ref[pl.ds(r, 1), :] = row * keep
            return carry

        lax.fori_loop(0, TT, gather_row, 0, unroll=unroll)

    return kernel


# ---------------------------------------------------------------------------
# Fallback path: table stays in HBM, rows gathered with per-row async DMA.
# ---------------------------------------------------------------------------
def _make_hbm_gather_kernel(Tp: int, TT: int, unroll: int):
    def kernel(tok_ref, len_ref, table_ref, out_ref, row_buf, sems):
        # table_ref: HBM (V, Dp)  (memory_space=pl.ANY)
        # row_buf:   VMEM (TT, Dp) DMA landing buffer
        # sems:      (TT,) DMA semaphores, one per gathered row
        b = pl.program_id(0)
        t = pl.program_id(1)
        base = b * Tp + t * TT
        length = len_ref[b]

        def issue(r, carry):
            tid = tok_ref[base + r]
            pltpu.make_async_copy(
                table_ref.at[pl.ds(tid, 1)], row_buf.at[pl.ds(r, 1)], sems.at[r]
            ).start()
            return carry

        def drain(r, carry):
            tid = tok_ref[base + r]  # rebuild the *identical* descriptor for the wait
            pltpu.make_async_copy(
                table_ref.at[pl.ds(tid, 1)], row_buf.at[pl.ds(r, 1)], sems.at[r]
            ).wait()
            return carry

        lax.fori_loop(0, TT, issue, 0, unroll=unroll)   # overlap all TT row DMAs
        lax.fori_loop(0, TT, drain, 0, unroll=unroll)

        pos = t * TT + lax.broadcasted_iota(jnp.int32, (TT, 1), 0)
        vals = row_buf[...]
        out_ref[...] = jnp.where(pos < length, vals, jnp.zeros_like(vals))

    return kernel


def seq2seq_encoder_forward(src_tokens, src_lengths, embed_table, *, tile_t=128):
    """src_tokens: (B, T) int; src_lengths: (B,) int or None; embed_table: (V, D)."""
    B, T = src_tokens.shape
    V, D = embed_table.shape
    dtype = embed_table.dtype
    itemsize = jnp.dtype(dtype).itemsize

    sub = 16 if itemsize == 2 else 8              # bf16 packs (16, 128) per vreg
    Dp = _round_up(D, 128)                        # lane-dense output last dim
    TT = min(_round_up(tile_t, sub), _round_up(T, sub))
    Tp = _round_up(T, TT)

    # Host-side clamp (jnp.take clip semantics) keeps the per-row loop scalar-lean.
    tok = jnp.clip(src_tokens.astype(jnp.int32), 0, V - 1)
    if Tp != T:
        tok = jnp.pad(tok, ((0, 0), (0, Tp - T)))  # padded slots masked in-kernel
    tok_flat = tok.reshape(B * Tp)

    if src_lengths is None:
        lens = jnp.full((B,), T, dtype=jnp.int32)
    else:
        lens = src_lengths.astype(jnp.int32)

    # Native dtype; pad the feature dim only when it is not lane-aligned.
    table = embed_table if Dp == D else jnp.pad(embed_table, ((0, 0), (0, Dp - D)))

    budget = _vmem_budget_bytes()
    table_bytes = V * Dp * itemsize
    out_tile_bytes = TT * Dp * itemsize
    # 2x table (resident block may be double-buffered) + 2x out tile (pipeline)
    # + 1 MiB slack for Mosaic internals.
    resident_need = 2 * table_bytes + 2 * out_tile_bytes + (1 << 20)
    use_resident = resident_need <= budget

    unroll = max(1, min(8, TT))
    grid = (B, Tp // TT)
    out_spec = pl.BlockSpec((None, TT, Dp), lambda b, t, *_: (b, t, 0))

    if use_resident:
        kernel = _make_resident_kernel(Tp=Tp, TT=TT, unroll=unroll)
        in_specs = [pl.BlockSpec((V, Dp), lambda b, t, *_: (0, 0))]   # resident table
        scratch_shapes = []
    else:
        kernel = _make_hbm_gather_kernel(Tp=Tp, TT=TT, unroll=unroll)
        in_specs = [pl.BlockSpec(memory_space=pl.ANY)]                # table in HBM
        scratch_shapes = [
            pltpu.VMEM((TT, Dp), dtype),
            pltpu.SemaphoreType.DMA((TT,)),
        ]

    out = pl.pallas_call(
        kernel,
        out_shape=jax.ShapeDtypeStruct((B, Tp, Dp), dtype),
        grid_spec=pltpu.PrefetchScalarGridSpec(
            num_scalar_prefetch=2,                      # tok_flat, lens -> SMEM
            grid=grid,
            in_specs=in_specs,
            out_specs=out_spec,
            scratch_shapes=scratch_shapes,
        ),
        compiler_params=pltpu.CompilerParams(
            dimension_semantics=("parallel", "parallel"),   # megacore-shardable
            vmem_limit_bytes=int(budget),
        ),
    )(tok_flat, lens, table)

    return out[:, :T, :D]


if __name__ == "__main__":
    B, T = 2, 8          # batch, sequence length
    V, D = 32, 32        # "dictionary" (vocab) size, embedding dim

    key = jax.random.PRNGKey(0)
    k_tok, k_emb = jax.random.split(key)

    src_tokens = jax.random.randint(k_tok, (B, T), minval=1, maxval=V,
                                    dtype=jnp.int32)
    src_lengths = jnp.array([T, 5], dtype=jnp.int32)
    embed_table = (jax.random.normal(k_emb, (V, D), dtype=jnp.float32)
                   * (1.0 / jnp.sqrt(D)))

    out = seq2seq_encoder_forward(src_tokens, src_lengths, embed_table)
    out = jax.block_until_ready(out)

    # Pure-JAX reference for sanity.
    ref = jnp.take(embed_table, src_tokens, axis=0)                 # (B, T, D)
    mask = (jnp.arange(T)[None, :] < src_lengths[:, None]).astype(embed_table.dtype)
    ref = ref * mask[:, :, None]
    assert out.shape == (B, T, D)
    assert jnp.allclose(out, ref, atol=1e-5, rtol=1e-5)

    print("KERNEL_OK")
</pallas_src>

<mosaic_0001>
module attributes {stable_mosaic.version = 11 : i64} {
  func.func @kernel(%arg0: i32, %arg1: i32, %arg2: memref<16xi32, #tpu.memory_space<smem>>, %arg3: memref<2xi32, #tpu.memory_space<smem>>, %arg4: memref<32x128xf32, #tpu.memory_space<vmem>>, %arg5: memref<1x8x128xf32, #tpu.memory_space<vmem>>) attributes {dimension_semantics = [#tpu.dimension_semantics<parallel>, #tpu.dimension_semantics<parallel>], iteration_bounds = array<i64: 2, 1>, scalar_prefetch = 2 : i64, scratch_operands = 0 : i64, tpu.core_type = #tpu.core_type<tc>, window_params = [{pipeline_mode = #tpu.pipeline_mode<synchronous>, transform_indices = @transform_0, window_bounds = array<i64: 32, 128>}, {transform_indices = @transform_1, window_bounds = array<i64: 1, 8, 128>}]} {
    %c8_i32 = arith.constant 8 : i32
    %0 = arith.muli %arg0, %c8_i32 : i32
    %c8_i32_0 = arith.constant 8 : i32
    %1 = arith.muli %arg1, %c8_i32_0 : i32
    %2 = arith.addi %0, %1 : i32
    %3 = arith.index_cast %arg0 : i32 to index
    %4 = memref.load %arg3[%3] : memref<2xi32, #tpu.memory_space<smem>>
    %c8_i32_1 = arith.constant 8 : i32
    %5 = arith.muli %arg1, %c8_i32_1 : i32
    %c0_i32 = arith.constant 0 : i32
    %6 = arith.addi %2, %c0_i32 : i32
    %7 = arith.index_cast %6 : i32 to index
    %8 = memref.load %arg2[%7] : memref<16xi32, #tpu.memory_space<smem>>
    %9 = arith.index_cast %8 : i32 to index
    %c0 = arith.constant 0 : index
    %10 = vector.load %arg4[%9, %c0] : memref<32x128xf32, #tpu.memory_space<vmem>>, vector<1x128xf32>
    %11 = arith.addi %5, %c0_i32 : i32
    %12 = arith.cmpi slt, %11, %4 : i32
    %13 = arith.extui %12 : i1 to i32
    %14 = arith.sitofp %13 : i32 to f32
    %15 = vector.broadcast %14 : f32 to vector<1x128xf32>
    %16 = arith.mulf %10, %15 : vector<1x128xf32>
    %c0_2 = arith.constant 0 : index
    %17 = arith.index_cast %c0_i32 : i32 to index
    %c0_3 = arith.constant 0 : index
    %18 = vector.load %arg5[%c0_2, %17, %c0_3] : memref<1x8x128xf32, #tpu.memory_space<vmem>>, vector<1x1x128xf32>
    %19 = vector.shape_cast %18 : vector<1x1x128xf32> to vector<1x128xf32>
    %20 = vector.shape_cast %16 : vector<1x128xf32> to vector<1x1x128xf32>
    tpu.vector_store %arg5[%c0_2, %17, %c0_3], %20 {strides = array<i32>} : memref<1x8x128xf32, #tpu.memory_space<vmem>>, vector<1x1x128xf32>,
    %c1_i32 = arith.constant 1 : i32
    %21 = arith.addi %2, %c1_i32 : i32
    %22 = arith.index_cast %21 : i32 to index
    %23 = memref.load %arg2[%22] : memref<16xi32, #tpu.memory_space<smem>>
    %24 = arith.index_cast %23 : i32 to index
    %c0_4 = arith.constant 0 : index
    %25 = vector.load %arg4[%24, %c0_4] : memref<32x128xf32, #tpu.memory_space<vmem>>, vector<1x128xf32>
    %26 = arith.addi %5, %c1_i32 : i32
    %27 = arith.cmpi slt, %26, %4 : i32
    %28 = arith.extui %27 : i1 to i32
    %29 = arith.sitofp %28 : i32 to f32
    %30 = vector.broadcast %29 : f32 to vector<1x128xf32>
    %31 = arith.mulf %25, %30 : vector<1x128xf32>
    %c0_5 = arith.constant 0 : index
    %32 = arith.index_cast %c1_i32 : i32 to index
    %c0_6 = arith.constant 0 : index
    %33 = vector.load %arg5[%c0_5, %32, %c0_6] : memref<1x8x128xf32, #tpu.memory_space<vmem>>, vector<1x1x128xf32>
    %34 = vector.shape_cast %33 : vector<1x1x128xf32> to vector<1x128xf32>
    %35 = vector.shape_cast %31 : vector<1x128xf32> to vector<1x1x128xf32>
    tpu.vector_store %arg5[%c0_5, %32, %c0_6], %35 {strides = array<i32>} : memref<1x8x128xf32, #tpu.memory_space<vmem>>, vector<1x1x128xf32>,
    %c2_i32 = arith.constant 2 : i32
    %36 = arith.addi %2, %c2_i32 : i32
    %37 = arith.index_cast %36 : i32 to index
    %38 = memref.load %arg2[%37] : memref<16xi32, #tpu.memory_space<smem>>
    %39 = arith.index_cast %38 : i32 to index
    %c0_7 = arith.constant 0 : index
    %40 = vector.load %arg4[%39, %c0_7] : memref<32x128xf32, #tpu.memory_space<vmem>>, vector<1x128xf32>
    %41 = arith.addi %5, %c2_i32 : i32
    %42 = arith.cmpi slt, %41, %4 : i32
    %43 = arith.extui %42 : i1 to i32
    %44 = arith.sitofp %43 : i32 to f32
    %45 = vector.broadcast %44 : f32 to vector<1x128xf32>
    %46 = arith.mulf %40, %45 : vector<1x128xf32>
    %c0_8 = arith.constant 0 : index
    %47 = arith.index_cast %c2_i32 : i32 to index
    %c0_9 = arith.constant 0 : index
    %48 = vector.load %arg5[%c0_8, %47, %c0_9] : memref<1x8x128xf32, #tpu.memory_space<vmem>>, vector<1x1x128xf32>
    %49 = vector.shape_cast %48 : vector<1x1x128xf32> to vector<1x128xf32>
    %50 = vector.shape_cast %46 : vector<1x128xf32> to vector<1x1x128xf32>
    tpu.vector_store %arg5[%c0_8, %47, %c0_9], %50 {strides = array<i32>} : memref<1x8x128xf32, #tpu.memory_space<vmem>>, vector<1x1x128xf32>,
    %c3_i32 = arith.constant 3 : i32
    %51 = arith.addi %2, %c3_i32 : i32
    %52 = arith.index_cast %51 : i32 to index
    %53 = memref.load %arg2[%52] : memref<16xi32, #tpu.memory_space<smem>>
    %54 = arith.index_cast %53 : i32 to index
    %c0_10 = arith.constant 0 : index
    %55 = vector.load %arg4[%54, %c0_10] : memref<32x128xf32, #tpu.memory_space<vmem>>, vector<1x128xf32>
    %56 = arith.addi %5, %c3_i32 : i32
    %57 = arith.cmpi slt, %56, %4 : i32
    %58 = arith.extui %57 : i1 to i32
    %59 = arith.sitofp %58 : i32 to f32
    %60 = vector.broadcast %59 : f32 to vector<1x128xf32>
    %61 = arith.mulf %55, %60 : vector<1x128xf32>
    %c0_11 = arith.constant 0 : index
    %62 = arith.index_cast %c3_i32 : i32 to index
    %c0_12 = arith.constant 0 : index
    %63 = vector.load %arg5[%c0_11, %62, %c0_12] : memref<1x8x128xf32, #tpu.memory_space<vmem>>, vector<1x1x128xf32>
    %64 = vector.shape_cast %63 : vector<1x1x128xf32> to vector<1x128xf32>
    %65 = vector.shape_cast %61 : vector<1x128xf32> to vector<1x1x128xf32>
    tpu.vector_store %arg5[%c0_11, %62, %c0_12], %65 {strides = array<i32>} : memref<1x8x128xf32, #tpu.memory_space<vmem>>, vector<1x1x128xf32>,
    %c4_i32 = arith.constant 4 : i32
    %66 = arith.addi %2, %c4_i32 : i32
    %67 = arith.index_cast %66 : i32 to index
    %68 = memref.load %arg2[%67] : memref<16xi32, #tpu.memory_space<smem>>
    %69 = arith.index_cast %68 : i32 to index
    %c0_13 = arith.constant 0 : index
    %70 = vector.load %arg4[%69, %c0_13] : memref<32x128xf32, #tpu.memory_space<vmem>>, vector<1x128xf32>
    %71 = arith.addi %5, %c4_i32 : i32
    %72 = arith.cmpi slt, %71, %4 : i32
    %73 = arith.extui %72 : i1 to i32
    %74 = arith.sitofp %73 : i32 to f32
    %75 = vector.broadcast %74 : f32 to vector<1x128xf32>
    %76 = arith.mulf %70, %75 : vector<1x128xf32>
    %c0_14 = arith.constant 0 : index
    %77 = arith.index_cast %c4_i32 : i32 to index
    %c0_15 = arith.constant 0 : index
    %78 = vector.load %arg5[%c0_14, %77, %c0_15] : memref<1x8x128xf32, #tpu.memory_space<vmem>>, vector<1x1x128xf32>
    %79 = vector.shape_cast %78 : vector<1x1x128xf32> to vector<1x128xf32>
    %80 = vector.shape_cast %76 : vector<1x128xf32> to vector<1x1x128xf32>
    tpu.vector_store %arg5[%c0_14, %77, %c0_15], %80 {strides = array<i32>} : memref<1x8x128xf32, #tpu.memory_space<vmem>>, vector<1x1x128xf32>,
    %c5_i32 = arith.constant 5 : i32
    %81 = arith.addi %2, %c5_i32 : i32
    %82 = arith.index_cast %81 : i32 to index
    %83 = memref.load %arg2[%82] : memref<16xi32, #tpu.memory_space<smem>>
    %84 = arith.index_cast %83 : i32 to index
    %c0_16 = arith.constant 0 : index
    %85 = vector.load %arg4[%84, %c0_16] : memref<32x128xf32, #tpu.memory_space<vmem>>, vector<1x128xf32>
    %86 = arith.addi %5, %c5_i32 : i32
    %87 = arith.cmpi slt, %86, %4 : i32
    %88 = arith.extui %87 : i1 to i32
    %89 = arith.sitofp %88 : i32 to f32
    %90 = vector.broadcast %89 : f32 to vector<1x128xf32>
    %91 = arith.mulf %85, %90 : vector<1x128xf32>
    %c0_17 = arith.constant 0 : index
    %92 = arith.index_cast %c5_i32 : i32 to index
    %c0_18 = arith.constant 0 : index
    %93 = vector.load %arg5[%c0_17, %92, %c0_18] : memref<1x8x128xf32, #tpu.memory_space<vmem>>, vector<1x1x128xf32>
    %94 = vector.shape_cast %93 : vector<1x1x128xf32> to vector<1x128xf32>
    %95 = vector.shape_cast %91 : vector<1x128xf32> to vector<1x1x128xf32>
    tpu.vector_store %arg5[%c0_17, %92, %c0_18], %95 {strides = array<i32>} : memref<1x8x128xf32, #tpu.memory_space<vmem>>, vector<1x1x128xf32>,
    %c6_i32 = arith.constant 6 : i32
    %96 = arith.addi %2, %c6_i32 : i32
    %97 = arith.index_cast %96 : i32 to index
    %98 = memref.load %arg2[%97] : memref<16xi32, #tpu.memory_space<smem>>
    %99 = arith.index_cast %98 : i32 to index
    %c0_19 = arith.constant 0 : index
    %100 = vector.load %arg4[%99, %c0_19] : memref<32x128xf32, #tpu.memory_space<vmem>>, vector<1x128xf32>
    %101 = arith.addi %5, %c6_i32 : i32
    %102 = arith.cmpi slt, %101, %4 : i32
    %103 = arith.extui %102 : i1 to i32
    %104 = arith.sitofp %103 : i32 to f32
    %105 = vector.broadcast %104 : f32 to vector<1x128xf32>
    %106 = arith.mulf %100, %105 : vector<1x128xf32>
    %c0_20 = arith.constant 0 : index
    %107 = arith.index_cast %c6_i32 : i32 to index
    %c0_21 = arith.constant 0 : index
    %108 = vector.load %arg5[%c0_20, %107, %c0_21] : memref<1x8x128xf32, #tpu.memory_space<vmem>>, vector<1x1x128xf32>
    %109 = vector.shape_cast %108 : vector<1x1x128xf32> to vector<1x128xf32>
    %110 = vector.shape_cast %106 : vector<1x128xf32> to vector<1x1x128xf32>
    tpu.vector_store %arg5[%c0_20, %107, %c0_21], %110 {strides = array<i32>} : memref<1x8x128xf32, #tpu.memory_space<vmem>>, vector<1x1x128xf32>,
    %c7_i32 = arith.constant 7 : i32
    %111 = arith.addi %2, %c7_i32 : i32
    %112 = arith.index_cast %111 : i32 to index
    %113 = memref.load %arg2[%112] : memref<16xi32, #tpu.memory_space<smem>>
    %114 = arith.index_cast %113 : i32 to index
    %c0_22 = arith.constant 0 : index
    %115 = vector.load %arg4[%114, %c0_22] : memref<32x128xf32, #tpu.memory_space<vmem>>, vector<1x128xf32>
    %116 = arith.addi %5, %c7_i32 : i32
    %117 = arith.cmpi slt, %116, %4 : i32
    %118 = arith.extui %117 : i1 to i32
    %119 = arith.sitofp %118 : i32 to f32
    %120 = vector.broadcast %119 : f32 to vector<1x128xf32>
    %121 = arith.mulf %115, %120 : vector<1x128xf32>
    %c0_23 = arith.constant 0 : index
    %122 = arith.index_cast %c7_i32 : i32 to index
    %c0_24 = arith.constant 0 : index
    %123 = vector.load %arg5[%c0_23, %122, %c0_24] : memref<1x8x128xf32, #tpu.memory_space<vmem>>, vector<1x1x128xf32>
    %124 = vector.shape_cast %123 : vector<1x1x128xf32> to vector<1x128xf32>
    %125 = vector.shape_cast %121 : vector<1x128xf32> to vector<1x1x128xf32>
    tpu.vector_store %arg5[%c0_23, %122, %c0_24], %125 {strides = array<i32>} : memref<1x8x128xf32, #tpu.memory_space<vmem>>, vector<1x1x128xf32>,
    %c8_i32_25 = arith.constant 8 : i32
    return
  }
  func.func @transform_0(%arg0: i32, %arg1: i32, %arg2: memref<16xi32, #tpu.memory_space<smem>>, %arg3: memref<2xi32, #tpu.memory_space<smem>>) -> (i32, i32) {
    %c0_i32 = arith.constant 0 : i32
    %c0_i32_0 = arith.constant 0 : i32
    %c0_i32_1 = arith.constant 0 : i32
    return %c0_i32, %c0_i32_0 : i32, i32
  }
  func.func @transform_1(%arg0: i32, %arg1: i32, %arg2: memref<16xi32, #tpu.memory_space<smem>>, %arg3: memref<2xi32, #tpu.memory_space<smem>>) -> (i32, i32, i32) {
    %c0_i32 = arith.constant 0 : i32
    %c0_i32_0 = arith.constant 0 : i32
    return %arg0, %arg1, %c0_i32 : i32, i32, i32
  }
}

</mosaic_0001>

<llo_original>
// kernel: tpu_custom_call.1
$region0: #{tpu_custom_call.1}
  #allocation0 [shape = 'u32[]', space=smem, size = 0x4, offset = 0x4, fixed_abs, tag = 'smem constant byte address 0x4 - core index']
  #allocation1 [shape = 'u32[72,128]{1,0:T(1,128)}', space=vmem, size = 0x9000, scoped, tag = 'internal scratch']
  #allocation2 [shape = 's32[1]{0}', space=sflag, size = 0x4, scoped, tag = 'scoped memory for tpu_custom_call.1']
  #allocation3 [shape = 'u8[512]{0}', space=smem, size = 0x200, scoped, tag = 'prefetched SMEM operand 0']
  #allocation4 [shape = 'u8[512]{0}', space=smem, size = 0x200, scoped, tag = 'prefetched SMEM operand 1']
  %s0 = inlined_call_operand.hbm [shape: s32[16], index: 0, kind: input, shape index: {}]
  %s1 = inlined_call_operand.hbm [shape: s32[2], index: 1, kind: input, shape index: {}]
  %s2 = inlined_call_operand.hbm [shape: f32[32,128], index: 2, kind: input, shape index: {}]
  %s3 = inlined_call_operand.hbm [shape: f32[2,8,128], index: 3, kind: output, shape index: {}]
  %s4 = sld [smem:[#allocation0]]
  $region41: #{tpu_custom_call.1} parent=0
    _
  %s6 = ssub.s32 1, %s4
  %s7 = scalar_select 0, %s6, %s4
  %s9 = sshll.u32 %s0, 4
  %s10 = int_to_ptr.hbm [resolvable:$true] %s9
  %12 = dma.hbm_to_smem %s10, 16, [#allocation3], [#allocation2]
  %s14 = sshll.u32 %s1, 4
  %s15 = int_to_ptr.hbm [resolvable:$true] %s14
  %17 = dma.hbm_to_smem %s15, 16, [#allocation4], [#allocation2]
  %19 = dma.done [#allocation2], 32
  %20 = sfence
  $region1: #{tpu_custom_call.1} parent=0
    #allocation5 [shape = 'u8[16384]{0}', space=vmem, size = 0x4000, scoped, tag = 'input window, operand 2, single buffered']
    #allocation6 [shape = 's32[2]{0}', space=sflag, size = 0x8, scoped, tag = 'scoped memory for tpu_custom_call.1']
    #allocation7 [shape = 's32[2]{0}', space=sflag, size = 0x8, scoped, tag = 'scoped memory for tpu_custom_call.1']
    #allocation8 [shape = 'u8[8192]{0}', space=vmem, size = 0x2000, scoped, tag = 'output window, operand 0']
    %21 = vsyncpa [#allocation6], 0
    %22 = vsyncpa [#allocation7], 0
    %s23 = scalar_lea.sflag [#allocation7], 1
    %24 = vsyncpa %s23, 0
    loop: start=0, step=1, limit=4
    $region2: #{tpu_custom_call.1} parent=1 // loop_pre_header
      _
    $region3: #{tpu_custom_call.1} parent=1 // loop_header
      %s26 = sphi 0, %s30
      %p27 = scmp.ge.s32.totalorder %s26, 4
      %s33 = sphi 0, %s45
      %s34 = sphi 0, %s41
      %s35 = sphi 0, %s33
      %s36 = sphi 0, %s34
      %s37 = sphi 0, %s35
      %s38 = sphi 0, %s36
      %s46 = sphi 0, %s46
      %s48 = sphi 0, %s46
      %s49 = sphi 0, %s48
      %s63 = sphi 0, %s49
      %s71 = sphi 0, %s73
      %s74 = sphi 0, %s71
      %s75 = sphi 0, %s74
      %s91 = sphi 0, %s75
    $region4: #{tpu_custom_call.1} parent=1 // loop_header_branch
      %29 = sbr.rel (%p27) target = $region8
    $region5: #{tpu_custom_call.1} parent=1 // loop_body
      %s31 = ssub.s32 %s26, 1
      %s32 = ssub.s32 %s26, 2
      %s39 = sadd.s32 1, %s34
      %p40 = scmp.ge.s32.totalorder %s39, 1
      %s41 = scalar_select %p40, 0, %s39
      %s42 = sadd.s32 1, %s33
      %s43 = scalar_select %p40, %s42, %s33
      %p44 = scmp.ge.s32.totalorder %s43, 2
      %s45 = scalar_select %p44, 0, %s43
      %s47 = sadd.s32 %s46, 1
      %p50 = scmp.eq.s32.totalorder %s26, 1
      %p51 = scmp.ne.s32.totalorder %s46, %s48
      %p52 = scmp.eq.s32.totalorder %s26, 0
      %p53 = por %p51, %p52
      %p54 = scmp.ne.s32.totalorder %s46, %s48
      %p55 = scmp.eq.s32.totalorder %s31, 1
      %p56 = por %p54, %p55
      %p57 = scmp.ne.s32.totalorder %s48, %s49
      %p58 = scmp.eq.s32.totalorder %s31, 0
      %p59 = por %p57, %p58
      %p60 = scmp.ne.s32.totalorder %s48, %s49
      %p61 = scmp.eq.s32.totalorder %s32, 1
      %p62 = por %p60, %p61
      %p64 = scmp.ne.s32.totalorder %s49, %s63
      %p65 = scmp.eq.s32.totalorder %s32, 0
      %p66 = por %p64, %p65
      %s67 = ssub.s32 %s33, %s45
      %s68 = ssub.s32 %s34, %s41
      %s69 = sor.u32 %s67, %s68
      %p70 = scmp.eq.s32.totalorder %s69, 0
      %s72 = sadd.s32 %s71, 1
      %s73 = scalar_select %p70, %s71, %s72
      %p76 = pneg %p70
      %p77 = scmp.eq.s32.totalorder %s26, 1
      %p78 = por %p76, %p77
      %p79 = scmp.ne.s32.totalorder %s71, %s74
      %p80 = scmp.eq.s32.totalorder %s26, 0
      %p81 = por %p79, %p80
      %p82 = scmp.ne.s32.totalorder %s71, %s74
      %p83 = scmp.eq.s32.totalorder %s31, 1
      %p84 = por %p82, %p83
      %p85 = scmp.ne.s32.totalorder %s74, %s75
      %p86 = scmp.eq.s32.totalorder %s31, 0
      %p87 = por %p85, %p86
      %p88 = scmp.ne.s32.totalorder %s74, %s75
      %p89 = scmp.eq.s32.totalorder %s32, 1
      %p90 = por %p88, %p89
      %p92 = scmp.ne.s32.totalorder %s75, %s91
      %p93 = scmp.eq.s32.totalorder %s32, 0
      %p94 = por %p92, %p93
      %p95 = scmp.le.s32.totalorder 1, %s26
      %p96 = scmp.lt.s32.totalorder %s26, 3
      %p97 = pnand %p95, %p96
      %p98 = pneg %p97
      // Predicated region
      $region9: #{tpu_custom_call.1} parent=5 // pred_check
        _
      $region10: #{tpu_custom_call.1} parent=5 // pred_check_branch
        %100 = sbr.rel (%p97) target = $region12
      $region11: #{tpu_custom_call.1} parent=5 // pred_region
        %s101 = ssub.s32 %s26, 1
        // Predicated region
        $region13: #{tpu_custom_call.1} parent=11 // pred_check
          %p102 = pneg %p59
        $region14: #{tpu_custom_call.1} parent=11 // pred_check_branch
          %104 = sbr.rel (%p102) target = $region16
        $region15: #{tpu_custom_call.1} parent=11 // pred_region
          %106 = vsyncadd [#allocation6], 0
          %s107 = sshll.u32 %s2, 4
          %s108 = int_to_ptr.hbm [resolvable:$true] %s107
          %s109 = sshll.u32 [#allocation5], 4
          %s110 = int_to_ptr.vmem [resolvable:$true] %s109
          %115 = dma.hbm_to_vmem [thread:$0]  %s108, 512, %s110, [#allocation6], 128, 128, 8
        $region16: #{tpu_custom_call.1} parent=11 // pred_fallthru
          _
      $region12: #{tpu_custom_call.1} parent=5 // pred_fallthru
        _
      %p116 = scmp.lt.s32.totalorder %s26, 2
      // Predicated region
      $region17: #{tpu_custom_call.1} parent=5 // pred_check
        %p117 = pneg %p116
      $region18: #{tpu_custom_call.1} parent=5 // pred_check_branch
        %119 = sbr.rel (%p117) target = $region20
      $region19: #{tpu_custom_call.1} parent=5 // pred_region
        _
      $region20: #{tpu_custom_call.1} parent=5 // pred_fallthru
        _
      %p120 = scmp.le.s32.totalorder 1, %s26
      %p121 = scmp.lt.s32.totalorder %s26, 3
      %p122 = pnand %p120, %p121
      %p123 = pneg %p122
      // Predicated region
      $region21: #{tpu_custom_call.1} parent=5 // pred_check
        _
      $region22: #{tpu_custom_call.1} parent=5 // pred_check_branch
        %125 = sbr.rel (%p122) target = $region24
      $region23: #{tpu_custom_call.1} parent=5 // pred_region
        %s126 = ssub.s32 %s26, 1
        // Predicated region
        $region25: #{tpu_custom_call.1} parent=23 // pred_check
          %p127 = pneg %p59
        $region26: #{tpu_custom_call.1} parent=23 // pred_check_branch
          %129 = sbr.rel (%p127) target = $region28
        $region27: #{tpu_custom_call.1} parent=23 // pred_region
          %131 = dma.done [#allocation6], 512
        $region28: #{tpu_custom_call.1} parent=23 // pred_fallthru
          _
        %p132 = pneg %p59
        %p133 = pneg %p56
        %p134 = pneg %p87
        %p135 = pneg %p84
        %s136 = sand.u32 %s74, 1
        %s137 = scalar_lea.sflag [#allocation7], %s136
        %s138 = sand.u32 %s74, 1
        %s139 = smul.addr %s138, 8
        %s140 = scalar_lea.vmem [#allocation8], %s139
        %s141 = smul.u32 %s35, 8
        %s142 = smul.u32 %s36, 8
        %s143 = sadd.s32 %s141, %s142
        %s144 = sld [smem:[#allocation4 + %s35]]
        %s145 = sld [smem:[#allocation3 + %s143]]
        %s146 = scalar_lea.vmem [#allocation5], %s145
        %v147 = vld [vmem:[%s146] sm:$0x1]
        %p148 = scmp.lt.s32.totalorder %s142, %s144
        %s149 = scalar_select %p148, 1, 0
        %s150 = scvt.s32.f32 %s149
        %v151 = vstv %s150
        %v152 = vmul.f32 %v147, %v151
        %153 = vst [vmem:[%s140] sm:$0x1] %v152
        %s154 = sadd.s32 %s143, 1
        %s155 = sld [smem:[#allocation3 + %s154]]
        %s156 = scalar_lea.vmem [#allocation5], %s155
        %v157 = vld [vmem:[%s156] sm:$0x1]
        %s158 = sadd.s32 %s142, 1
        %p159 = scmp.lt.s32.totalorder %s158, %s144
        %s160 = scalar_select %p159, 1, 0
        %s161 = scvt.s32.f32 %s160
        %v162 = vstv %s161
        %v163 = vmul.f32 %v157, %v162
        %164 = vst [vmem:[%s140 + $0x1] sm:$0x1] %v163
        %s165 = sadd.s32 %s143, 2
        %s166 = sld [smem:[#allocation3 + %s165]]
        %s167 = scalar_lea.vmem [#allocation5], %s166
        %v168 = vld [vmem:[%s167] sm:$0x1]
        %s169 = sadd.s32 %s142, 2
        %p170 = scmp.lt.s32.totalorder %s169, %s144
        %s171 = scalar_select %p170, 1, 0
        %s172 = scvt.s32.f32 %s171
        %v173 = vstv %s172
        %v174 = vmul.f32 %v168, %v173
        %175 = vst [vmem:[%s140 + $0x2] sm:$0x1] %v174
        %s176 = sadd.s32 %s143, 3
        %s177 = sld [smem:[#allocation3 + %s176]]
        %s178 = scalar_lea.vmem [#allocation5], %s177
        %v179 = vld [vmem:[%s178] sm:$0x1]
        %s180 = sadd.s32 %s142, 3
        %p181 = scmp.lt.s32.totalorder %s180, %s144
        %s182 = scalar_select %p181, 1, 0
        %s183 = scvt.s32.f32 %s182
        %v184 = vstv %s183
        %v185 = vmul.f32 %v179, %v184
        %186 = vst [vmem:[%s140 + $0x3] sm:$0x1] %v185
        %s187 = sadd.s32 %s143, 4
        %s188 = sld [smem:[#allocation3 + %s187]]
        %s189 = scalar_lea.vmem [#allocation5], %s188
        %v190 = vld [vmem:[%s189] sm:$0x1]
        %s191 = sadd.s32 %s142, 4
        %p192 = scmp.lt.s32.totalorder %s191, %s144
        %s193 = scalar_select %p192, 1, 0
        %s194 = scvt.s32.f32 %s193
        %v195 = vstv %s194
        %v196 = vmul.f32 %v190, %v195
        %197 = vst [vmem:[%s140 + $0x4] sm:$0x1] %v196
        %s198 = sadd.s32 %s143, 5
        %s199 = sld [smem:[#allocation3 + %s198]]
        %s200 = scalar_lea.vmem [#allocation5], %s199
        %v201 = vld [vmem:[%s200] sm:$0x1]
        %s202 = sadd.s32 %s142, 5
        %p203 = scmp.lt.s32.totalorder %s202, %s144
        %s204 = scalar_select %p203, 1, 0
        %s205 = scvt.s32.f32 %s204
        %v206 = vstv %s205
        %v207 = vmul.f32 %v201, %v206
        %208 = vst [vmem:[%s140 + $0x5] sm:$0x1] %v207
        %s209 = sadd.s32 %s143, 6
        %s210 = sld [smem:[#allocation3 + %s209]]
        %s211 = scalar_lea.vmem [#allocation5], %s210
        %v212 = vld [vmem:[%s211] sm:$0x1]
        %s213 = sadd.s32 %s142, 6
        %p214 = scmp.lt.s32.totalorder %s213, %s144
        %s215 = scalar_select %p214, 1, 0
        %s216 = scvt.s32.f32 %s215
        %v217 = vstv %s216
        %v218 = vmul.f32 %v212, %v217
        %219 = vst [vmem:[%s140 + $0x6] sm:$0x1] %v218
        %s220 = sadd.s32 %s143, 7
        %s221 = sld [smem:[#allocation3 + %s220]]
        %s222 = scalar_lea.vmem [#allocation5], %s221
        %v223 = vld [vmem:[%s222] sm:$0x1]
        %s224 = sadd.s32 %s142, 7
        %p225 = scmp.lt.s32.totalorder %s224, %s144
        %s226 = scalar_select %p225, 1, 0
        %s227 = scvt.s32.f32 %s226
        %v228 = vstv %s227
        %v229 = vmul.f32 %v223, %v228
        %230 = vst [vmem:[%s140 + $0x7] sm:$0x1] %v229
        %s231 = sand.u32 %s74, 1
        %s232 = scalar_lea.sflag [#allocation7], %s231
        %s233 = sand.u32 %s74, 1
        %s234 = smul.addr %s233, 8
        %s235 = scalar_lea.vmem [#allocation8], %s234
        // Predicated region
        $region29: #{tpu_custom_call.1} parent=23 // pred_check
          %p236 = pneg %p84
        $region30: #{tpu_custom_call.1} parent=23 // pred_check_branch
          %238 = sbr.rel (%p236) target = $region32
        $region31: #{tpu_custom_call.1} parent=23 // pred_region
          %240 = vsyncadd %s232, 0
          %s241 = sadd.s32 %s36, %s35
          %s242 = smul.addr %s241, 8
          %s243 = scalar_lea.hbm %s3, %s242
          %s245 = sshll.u32 %s235, 4
          %s246 = int_to_ptr.vmem [resolvable:$true] %s245
          %s247 = sshll.u32 %s243, 4
          %s248 = int_to_ptr.hbm [resolvable:$true] %s247
          %250 = dma.vmem_to_hbm [thread:$0]  %s246, 128, %s248, %s232
        $region32: #{tpu_custom_call.1} parent=23 // pred_fallthru
          _
      $region24: #{tpu_custom_call.1} parent=5 // pred_fallthru
        _
      %p251 = scmp.le.s32.totalorder 2, %s26
      // Predicated region
      $region33: #{tpu_custom_call.1} parent=5 // pred_check
        %p252 = pneg %p251
      $region34: #{tpu_custom_call.1} parent=5 // pred_check_branch
        %254 = sbr.rel (%p252) target = $region36
      $region35: #{tpu_custom_call.1} parent=5 // pred_region
        %s255 = ssub.s32 %s26, 2
        // Predicated region
        $region37: #{tpu_custom_call.1} parent=35 // pred_check
          %p256 = pneg %p90
        $region38: #{tpu_custom_call.1} parent=35 // pred_check_branch
          %258 = sbr.rel (%p256) target = $region40
        $region39: #{tpu_custom_call.1} parent=35 // pred_region
          %s259 = sand.u32 %s75, 1
          %s260 = scalar_lea.sflag [#allocation7], %s259
          %s261 = sand.u32 %s75, 1
          %s262 = smul.addr %s261, 8
          %s263 = scalar_lea.vmem [#allocation8], %s262
          %265 = dma.done %s260, 128
        $region40: #{tpu_custom_call.1} parent=35 // pred_fallthru
          _
      $region36: #{tpu_custom_call.1} parent=5 // pred_fallthru
        _
    $region6: #{tpu_custom_call.1} parent=1 // loop_footer
      %s30 = sadd.s32 1, %s26
    $region7: #{tpu_custom_call.1} parent=1 // loop_footer_branch
      %25 = sbr.rel target = $region3
    $region8: #{tpu_custom_call.1} parent=1 // loop_exit
      _
    %266 = vsyncpa [#allocation6], 1
    %s267 = scalar_lea.sflag [#allocation6], 1
    %268 = vsyncpa %s267, 1
    %269 = vsyncpa [#allocation7], 1
    %s270 = scalar_lea.sflag [#allocation7], 1
    %271 = vsyncpa %s270, 1

</llo_original>
